<compile_context>
chip_gen: v7x
topology: tpu7x:2x2x1
jax: 0.10.0
libtpu: 0.0.40
codegen_flags: <defaults>
</compile_context>

<pallas_src>
import functools

import numpy as np
import jax
import jax.numpy as jnp
from jax import lax
from jax.experimental import pallas as pl
from jax.experimental.pallas import tpu as pltpu

try:  # optional; a pure-python Hungarian fallback is provided below
    from scipy.optimize import linear_sum_assignment as _scipy_lsa
except Exception:  # pragma: no cover
    _scipy_lsa = None


class TrajParamIndex:
    X = 0; Y = 1; Z = 2
    VX = 3; VY = 4
    AX = 5; AY = 6
    YAW = 7
    LENGTH = 8; WIDTH = 9; HEIGHT = 10
    HAS_OBJECT = 11; STATIC = 12; OCCLUDED = 13
    CAR = 14; SUV = 15; TRUCK = 16; BUS = 17; PEDESTRIAN = 18; BICYCLE = 19; UNKNOWN = 20
    END_OF_INDEX = 21


T = TrajParamIndex
N_CLS = T.END_OF_INDEX - T.CAR     # 7 object classes
K_PARAM = T.END_OF_INDEX           # 21 trajectory parameters
OUT_LANES = 128                    # lane-dense width of the loss output slab
LOSS_NAMES = ('loss_pos', 'loss_vel', 'loss_acc', 'loss_dim',
              'loss_yaw', 'loss_type', 'loss_attr', 'fp_loss_exist')


def _round_up(x, m):
    return ((x + m - 1) // m) * m


# ---------------------------------------------------------------------------
# Kernel A: matching-cost matrices for ALL decoder layers of one batch element.
#   cost[l, m, n] = 1 - score(pred[l, n], gt[m])
#   score = 0.6 * iou(==0 in reference) + 0.4 * exp(-(dist + size_diff)/(size_diff + 1e-6))
#   halved if pred HAS_OBJECT value < 0.5 (raw value, as in the reference);
#   halved again if gt[m, argmax(pred_n[CAR:])] != 1 — the relative argmax indexing absolute gt
#   columns 0..6 reproduces the PyTorch reference's `gt_trajs[j, obj_index]` quirk exactly.
# ---------------------------------------------------------------------------
def _make_cost_kernel(num_layers):
    def kernel(predT_ref, gt_ref, cost_ref):
        gt = gt_ref[...]                                   # [m_pad, K]  GT rows on sublanes
        m_pad = gt.shape[0]
        n_pad = predT_ref.shape[2]

        # Exact {0,1} gate matrix for the class-gating quirk (gt columns 0..6 == 1).
        gt_is_one = (gt[:, 0:N_CLS] == 1.0).astype(jnp.float32)        # [m_pad, 7]
        row_ids = lax.broadcasted_iota(jnp.int32, (N_CLS, n_pad), 0)   # hoisted out of the loop

        for l in range(num_layers):
            pred = predT_ref[l, :, :]                      # [K, n_pad] params on sublanes

            def prow(c):                                   # [1, n_pad] sublane slice
                return pred[c:c + 1, :]

            def pair_l2(cols):                             # exact per-column pairwise L2
                acc = None
                for c in cols:
                    d = gt[:, c:c + 1] - prow(c)           # broadcast -> [m_pad, n_pad]
                    acc = d * d if acc is None else acc + d * d
                return jnp.sqrt(acc)

            dist = pair_l2((T.X, T.Y, T.Z))
            size_diff = pair_l2((T.LENGTH, T.WIDTH, T.HEIGHT))
            # Exact divide (not approx reciprocal): the kernel is latency-bound, and approx
            # error in the exponent could flip near-tie Hungarian assignments.
            score = 0.4 * jnp.exp(-(dist + size_diff) / (size_diff + 1e-6))

            has_obj = prow(T.HAS_OBJECT)                   # raw value vs 0.5, as in reference
            score = jnp.where(has_obj < 0.5, score * 0.5, score)

            # first-argmax over the 7 class logits (torch.argmax semantics), as a one-hot.
            cls = pred[T.CAR:, :]                          # [N_CLS, n_pad]
            max_val = jnp.max(cls, axis=0, keepdims=True)
            obj_idx = jnp.min(jnp.where(cls == max_val, row_ids, N_CLS),
                              axis=0, keepdims=True)       # [1, n_pad] int32
            onehot = (row_ids == obj_idx).astype(jnp.float32)          # [N_CLS, n_pad]

            # gate[m, n] = 1 iff gt[m, obj_idx[n]] == 1 — one MXU matmul of exact {0,1} masks.
            gate = jnp.dot(gt_is_one, onehot, preferred_element_type=jnp.float32)
            score = jnp.where(gate > 0.5, score, score * 0.5)

            cost_ref[l, :, :] = 1.0 - score
    return kernel


@functools.lru_cache(maxsize=None)
def _build_cost_fn(num_layers, batch, n_pad, m_pad):
    fn = pl.pallas_call(
        _make_cost_kernel(num_layers),
        out_shape=jax.ShapeDtypeStruct((batch, num_layers, m_pad, n_pad), jnp.float32),
        grid=(batch,),
        in_specs=[
            pl.BlockSpec((None, num_layers, K_PARAM, n_pad), lambda b: (b, 0, 0, 0)),
            pl.BlockSpec((None, m_pad, K_PARAM), lambda b: (b, 0, 0)),
        ],
        out_specs=pl.BlockSpec((None, num_layers, m_pad, n_pad), lambda b: (b, 0, 0, 0)),
        compiler_params=pltpu.CompilerParams(dimension_semantics=("parallel",)),
    )
    return jax.jit(fn)


# ---------------------------------------------------------------------------
# Kernel B: fused matched-pair + false-positive losses for ALL layers of one batch element.
#   Output sublane i (broadcast across 128 lanes) of layer l =
#   [pos, vel, acc, dim, yaw, type, attr, fp_exist][i]
# ---------------------------------------------------------------------------
def _make_loss_kernel(num_layers, n_real_preds):
    def kernel(predT_ref, gtT_ref, idx_ref, out_ref):
        gtT = gtT_ref[...]                                 # [K, m_pad]
        m_pad = gtT.shape[1]
        idx_all = idx_ref[...]                             # [L, n_pad] int32 matched-GT index (-1 = none)
        n_pad = idx_all.shape[1]

        # Hoisted loop invariants.
        lane = lax.broadcasted_iota(jnp.int32, (1, n_pad), 1)
        valid_pred = (lane < n_real_preds).astype(jnp.float32)
        gt_rows = lax.broadcasted_iota(jnp.int32, (m_pad, n_pad), 0)
        sub8 = lax.broadcasted_iota(jnp.int32, (8, 1), 0)

        def grp(rows, lo, hi):
            return jnp.sum(rows[lo:hi, :], axis=0, keepdims=True)      # [1, 1]

        def mean(s, denom):                                # sums are exactly zero when denom == 0
            return s / jnp.maximum(denom, 1.0)

        for l in range(num_layers):
            pred = predT_ref[l, :, :]                      # [K, n_pad]
            idx_l = idx_all[l:l + 1, :]                    # [1, n_pad]

            matched = (idx_l >= 0).astype(jnp.float32)                 # [1, n_pad]
            unmatched = valid_pred * (1.0 - matched)
            assign = (gt_rows == idx_l).astype(jnp.float32)            # [m_pad, n_pad] one-hot

            # Matched-GT params per prediction: single MXU matmul (zeros where unmatched).
            tgt = jnp.dot(gtT, assign, preferred_element_type=jnp.float32)   # [K, n_pad]

            absdiff = jnp.abs(pred - tgt) * matched
            bce = (jnp.maximum(pred, 0.0) - pred * tgt
                   + jnp.log(1.0 + jnp.exp(-jnp.abs(pred)))) * matched

            l1_rows = jnp.sum(absdiff, axis=1, keepdims=True)          # [K, 1]
            bce_rows = jnp.sum(bce, axis=1, keepdims=True)             # [K, 1]
            p_cnt = jnp.sum(matched, axis=1, keepdims=True)            # [1, 1]
            u_cnt = jnp.sum(unmatched, axis=1, keepdims=True)          # [1, 1]

            ho = pred[T.HAS_OBJECT:T.HAS_OBJECT + 1, :]
            fp = (jnp.maximum(ho, 0.0)
                  + jnp.log(1.0 + jnp.exp(-jnp.abs(ho)))) * unmatched
            fp_sum = jnp.sum(fp, axis=1, keepdims=True)

            vals = (
                mean(grp(l1_rows, T.X, T.Z + 1), p_cnt * 3.0),                    # loss_pos
                mean(grp(l1_rows, T.VX, T.VY + 1), p_cnt * 2.0),                  # loss_vel
                mean(grp(l1_rows, T.AX, T.AY + 1), p_cnt * 2.0),                  # loss_acc
                mean(grp(l1_rows, T.LENGTH, T.HEIGHT + 1), p_cnt * 3.0),          # loss_dim
                mean(grp(l1_rows, T.YAW, T.YAW + 1), p_cnt),                      # loss_yaw
                mean(grp(bce_rows, T.CAR, T.UNKNOWN + 1), p_cnt * 7.0),           # loss_type
                mean(grp(bce_rows, T.HAS_OBJECT, T.OCCLUDED + 1), p_cnt * 3.0),   # loss_attr
                mean(fp_sum, u_cnt),                                              # fp_loss_exist
            )
            # Stack the 8 scalars into an [8, 1] column, then one lane broadcast for the store.
            col = jnp.zeros((8, 1), jnp.float32)
            for i, v in enumerate(vals):
                col = col + jnp.where(sub8 == i, v, 0.0)
            out_ref[l, :, :] = jnp.broadcast_to(col, (8, OUT_LANES))
    return kernel


@functools.lru_cache(maxsize=None)
def _build_loss_fn(num_layers, batch, n_pad, m_pad, n_real_preds):
    fn = pl.pallas_call(
        _make_loss_kernel(num_layers, n_real_preds),
        out_shape=jax.ShapeDtypeStruct((batch, num_layers, 8, OUT_LANES), jnp.float32),
        grid=(batch,),
        in_specs=[
            pl.BlockSpec((None, num_layers, K_PARAM, n_pad), lambda b: (b, 0, 0, 0)),
            pl.BlockSpec((None, K_PARAM, m_pad), lambda b: (b, 0, 0)),
            pl.BlockSpec((None, num_layers, n_pad), lambda b: (b, 0, 0)),
        ],
        out_specs=pl.BlockSpec((None, num_layers, 8, OUT_LANES), lambda b: (b, 0, 0, 0)),
        compiler_params=pltpu.CompilerParams(dimension_semantics=("parallel",)),
    )
    return jax.jit(fn)


# ---------------------------------------------------------------------------
# Host-side Hungarian matching (no Pallas equivalent) + loss assembly
# ---------------------------------------------------------------------------
def _hungarian_core(cost):
    """Kuhn-Munkres with potentials (minimization). cost: [n, m] with n <= m."""
    n, m = cost.shape
    INF = float('inf')
    u = [0.0] * (n + 1)
    v = [0.0] * (m + 1)
    p = [0] * (m + 1)
    way = [0] * (m + 1)
    for i in range(1, n + 1):
        p[0] = i
        j0 = 0
        minv = [INF] * (m + 1)
        used = [False] * (m + 1)
        while True:
            used[j0] = True
            i0 = p[j0]
            delta = INF
            j1 = 0
            for j in range(1, m + 1):
                if not used[j]:
                    cur = cost[i0 - 1][j - 1] - u[i0] - v[j]
                    if cur < minv[j]:
                        minv[j] = cur
                        way[j] = j0
                    if minv[j] < delta:
                        delta = minv[j]
                        j1 = j
            for j in range(m + 1):
                if used[j]:
                    u[p[j]] += delta
                    v[j] -= delta
                else:
                    minv[j] -= delta
            j0 = j1
            if p[j0] == 0:
                break
        while True:
            j1 = way[j0]
            p[j0] = p[j1]
            j0 = j1
            if j0 == 0:
                break
    col_for_row = [-1] * (n + 1)
    for j in range(1, m + 1):
        if p[j]:
            col_for_row[p[j]] = j - 1
    return np.array(col_for_row[1:], dtype=np.int64)


def _linear_sum_assignment(cost):
    # TODO(synk): Hungarian assignment has no Pallas equivalent; it runs once on host
    # between the two device passes.
    cost = np.asarray(cost, dtype=np.float64)
    n, m = cost.shape
    if n == 0 or m == 0:
        return np.zeros(0, np.int64), np.zeros(0, np.int64)
    if _scipy_lsa is not None:
        r, c = _scipy_lsa(cost)
        return np.asarray(r, np.int64), np.asarray(c, np.int64)
    if n <= m:
        cols = _hungarian_core(cost)
        rows = np.arange(n, dtype=np.int64)
        return rows, cols
    rows = _hungarian_core(cost.T)
    cols = np.arange(m, dtype=np.int64)
    order = np.argsort(rows)
    return rows[order], cols[order]


class TrajectoryLoss:
    """JAX/Pallas port of the PyTorch TrajectoryLoss forward pass."""

    def __init__(self, weight_dict=None, frames: int = 10, dt: float = 0.1,
                 iou_method: str = 'iou2', aux_loss_weight: float = 0.5):
        self.weight_dict = weight_dict or {
            'loss_pos': 1.0, 'loss_vel': 1.0, 'loss_acc': 1.0, 'loss_dim': 1.0,
            'loss_yaw': 1.0, 'loss_type': 0.1, 'loss_attr': 0.1, 'fp_loss_exist': 1.0}
        self.layer_loss_weights = [0.3, 0.5, 0.7, 0.9, 1.1, 1.3, 1.5]
        self.frames = frames
        self.dt = dt
        self.iou_method = iou_method
        # diagnostics from the last forward pass (used by the self-check in __main__)
        self.last_match_idx = None
        self.last_num_matched = None
        self.last_num_unmatched = None
        self.last_loss_device = None

    def __call__(self, outputs, targets):
        gt = jnp.asarray(targets['trajs'], jnp.float32)                               # [B, M, K]
        pred_all = jnp.stack([jnp.asarray(o, jnp.float32) for o in outputs], axis=0)  # [L,B,N,K]
        num_layers, batch, n_pred, _ = pred_all.shape
        n_gt = gt.shape[1]
        n_pad = max(128, _round_up(n_pred, 128))
        m_pad = max(8, _round_up(max(n_gt, 1), 8))

        # Static padded device layouts: batch leading (one grid step per batch element, layers
        # folded into the block), params on sublanes, predictions lane-dense.
        pred_t = jnp.pad(jnp.transpose(pred_all, (1, 0, 3, 2)),
                         ((0, 0), (0, 0), (0, 0), (0, n_pad - n_pred)))   # [B,L,K,n_pad]
        gt_pad = jnp.pad(gt, ((0, 0), (0, m_pad - n_gt), (0, 0)))         # [B,m_pad,K]
        gt_t = jnp.transpose(gt_pad, (0, 2, 1))                           # [B,K,m_pad]

        # Pass 1: all (batch, layer) cost matrices from a single gridded kernel.
        cost_all = _build_cost_fn(num_layers, batch, n_pad, m_pad)(pred_t, gt_pad)

        # Single bulk device->host copy for the Hungarian matcher.
        cost_np = np.asarray(cost_all)                                    # [B,L,m_pad,n_pad]
        gt_np = np.asarray(gt)

        # Compact assignment: matched-GT row index per prediction (-1 = unmatched / padding).
        match_idx = np.full((batch, num_layers, n_pad), -1, np.int32)
        n_match = np.zeros((num_layers, batch), np.int64)
        for b in range(batch):
            valid = np.where(gt_np[b, :, T.HAS_OBJECT] > 0.5)[0]
            if valid.size == 0:
                continue
            for l in range(num_layers):
                sub = cost_np[b, l][valid][:, :n_pred].T                  # [N, n_valid] (= reference)
                rows, cols = _linear_sum_assignment(sub)
                match_idx[b, l, rows] = valid[cols]
                n_match[l, b] = rows.size
        n_unmatch = n_pred - n_match

        # Pass 2: all per-(batch,layer) loss scalars from a single gridded kernel.
        loss_all = _build_loss_fn(num_layers, batch, n_pad, m_pad, n_pred)(
            pred_t, gt_t, jnp.asarray(match_idx))
        self.last_loss_device = loss_all
        loss_np = np.asarray(loss_all)                                    # single bulk D2H copy

        self.last_match_idx = match_idx
        self.last_num_matched = n_match
        self.last_num_unmatched = n_unmatch

        # Assemble per-layer losses on host.  As in the reference, later batch elements
        # overwrite earlier ones and a key only exists if the matched/unmatched set was
        # non-empty for some batch element.
        losses = {}
        for l in range(num_layers):
            fp_bs = [b for b in range(batch) if n_unmatch[l, b] > 0]
            if fp_bs:
                losses[f'layer_{l}_fp_loss_exist'] = float(loss_np[fp_bs[-1], l, 7, 0])
            m_bs = [b for b in range(batch) if n_match[l, b] > 0]
            if m_bs:
                bb = m_bs[-1]
                for i, name in enumerate(LOSS_NAMES[:7]):
                    losses[f'layer_{l}_{name}'] = float(loss_np[bb, l, i, 0])

        weighted_losses = {}
        for k, v in losses.items():
            layer_idx = int(k.split('_')[1])
            post_fix = '_'.join(k.split('_')[2:])
            weight = self.weight_dict[post_fix] * self.layer_loss_weights[layer_idx]
            weighted_losses[k] = weight * v
        total_loss = sum(weighted_losses.values()) if weighted_losses else 0.0
        weighted_losses['loss'] = total_loss
        return weighted_losses


# ---------------------------------------------------------------------------
# Numpy reference (same assignment) used as an end-to-end self-check in __main__
# ---------------------------------------------------------------------------
def _numpy_reference(outputs_np, gt_np, match_idx, weight_dict, layer_weights):
    pred_np = np.stack([np.asarray(o, np.float64) for o in outputs_np], axis=0)
    gt_np = np.asarray(gt_np, np.float64)
    num_layers, batch, n_pred, _ = pred_np.shape
    losses = {}
    for l in range(num_layers):
        for b in range(batch):
            idx = match_idx[b, l, :n_pred]
            matched_preds = np.where(idx >= 0)[0]
            unmatched = np.where(idx < 0)[0]
            if unmatched.size:
                x = pred_np[l, b, unmatched, T.HAS_OBJECT]
                losses[f'layer_{l}_fp_loss_exist'] = float(
                    np.mean(np.maximum(x, 0.0) + np.log1p(np.exp(-np.abs(x)))))
            if matched_preds.size:
                pm = pred_np[l, b, matched_preds]
                tm = gt_np[b, idx[matched_preds]]

                def l1(lo, hi):
                    return float(np.mean(np.abs(pm[:, lo:hi] - tm[:, lo:hi])))

                def bce(lo, hi):
                    x = pm[:, lo:hi]
                    y = tm[:, lo:hi]
                    return float(np.mean(np.maximum(x, 0.0) - x * y
                                         + np.log1p(np.exp(-np.abs(x)))))

                losses[f'layer_{l}_loss_pos'] = l1(T.X, T.Z + 1)
                losses[f'layer_{l}_loss_vel'] = l1(T.VX, T.VY + 1)
                losses[f'layer_{l}_loss_acc'] = l1(T.AX, T.AY + 1)
                losses[f'layer_{l}_loss_dim'] = l1(T.LENGTH, T.HEIGHT + 1)
                losses[f'layer_{l}_loss_yaw'] = l1(T.YAW, T.YAW + 1)
                losses[f'layer_{l}_loss_type'] = bce(T.CAR, T.UNKNOWN + 1)
                losses[f'layer_{l}_loss_attr'] = bce(T.HAS_OBJECT, T.OCCLUDED + 1)
    weighted = {}
    for k, v in losses.items():
        layer_idx = int(k.split('_')[1])
        post_fix = '_'.join(k.split('_')[2:])
        weighted[k] = weight_dict[post_fix] * layer_weights[layer_idx] * v
    weighted['loss'] = sum(weighted.values())
    return weighted


if __name__ == "__main__":
    key = jax.random.PRNGKey(0)
    L, B, N, M, K = 3, 2, 8, 4, T.END_OF_INDEX
    keys = jax.random.split(key, L + 1)

    # decoder outputs: list of [B, N, K] trajectory parameter tensors (logits for binary fields)
    outputs = [jax.random.normal(keys[i], (B, N, K), dtype=jnp.float32) for i in range(L)]

    # ground truth trajectories [B, M, K]
    gt_np = np.array(jax.random.normal(keys[L], (B, M, K), dtype=jnp.float32)) * 2.0
    gt_np[:, :, T.HAS_OBJECT:] = 0.0
    gt_np[0, :3, T.HAS_OBJECT] = 1.0          # 3 valid objects in batch 0
    gt_np[1, :2, T.HAS_OBJECT] = 1.0          # 2 valid objects in batch 1
    gt_np[0, 0, T.CAR] = 1.0
    gt_np[0, 1, T.TRUCK] = 1.0
    gt_np[0, 2, T.PEDESTRIAN] = 1.0
    gt_np[1, 0, T.CAR] = 1.0
    gt_np[1, 1, T.BICYCLE] = 1.0
    gt_np[:, :, [T.LENGTH, T.WIDTH, T.HEIGHT]] = (
        np.abs(gt_np[:, :, [T.LENGTH, T.WIDTH, T.HEIGHT]]) + 1.0)
    targets = {'trajs': jnp.asarray(gt_np, dtype=jnp.float32)}

    criterion = TrajectoryLoss()
    losses = criterion(outputs, targets)
    jax.block_until_ready(criterion.last_loss_device)     # block on the kernel output
    total = float(losses['loss'])
    assert np.isfinite(total), "total loss is not finite"

    # Self-check: Pallas loss kernels vs a numpy reference that uses the same assignment.
    # Tolerance covers the MXU f32 target-select matmul precision.
    ref = _numpy_reference([np.asarray(o) for o in outputs], np.asarray(targets['trajs']),
                           criterion.last_match_idx, criterion.weight_dict,
                           criterion.layer_loss_weights)
    assert set(ref.keys()) == set(losses.keys()), (sorted(ref.keys()), sorted(losses.keys()))
    for k in sorted(ref.keys()):
        np.testing.assert_allclose(float(losses[k]), ref[k], rtol=1e-2, atol=1e-2,
                                   err_msg=f"mismatch for {k}")

    print("KERNEL_OK")
</pallas_src>

<mosaic_0001>
module attributes {stable_mosaic.version = 11 : i64} {
  func.func @kernel(%arg0: i32, %arg1: memref<1x3x21x128xf32, #tpu.memory_space<vmem>>, %arg2: memref<1x8x21xf32, #tpu.memory_space<vmem>>, %arg3: memref<1x3x8x128xf32, #tpu.memory_space<vmem>>) attributes {dimension_semantics = [#tpu.dimension_semantics<parallel>], iteration_bounds = array<i64: 2>, scalar_prefetch = 0 : i64, scratch_operands = 0 : i64, tpu.core_type = #tpu.core_type<tc>, window_params = [{transform_indices = @transform_0, window_bounds = array<i64: 1, 3, 21, 128>}, {transform_indices = @transform_1, window_bounds = array<i64: 1, 8, 21>}, {transform_indices = @transform_2, window_bounds = array<i64: 1, 3, 8, 128>}]} {
    %c0 = arith.constant 0 : index
    %c0_0 = arith.constant 0 : index
    %c0_1 = arith.constant 0 : index
    %0 = vector.load %arg2[%c0, %c0_0, %c0_1] : memref<1x8x21xf32, #tpu.memory_space<vmem>>, vector<1x8x21xf32>
    %1 = vector.shape_cast %0 : vector<1x8x21xf32> to vector<8x21xf32>
    %2 = vector.extract_strided_slice %1 {offsets = [0, 0], sizes = [8, 7], strides = [1, 1]} : vector<8x21xf32> to vector<8x7xf32>
    %cst = arith.constant 1.000000e+00 : f32
    %3 = vector.broadcast %cst : f32 to vector<8x7xf32>
    %4 = arith.cmpf oeq, %2, %3 : vector<8x7xf32>
    %5 = arith.extui %4 : vector<8x7xi1> to vector<8x7xi32>
    %6 = arith.sitofp %5 : vector<8x7xi32> to vector<8x7xf32>
    %7 = tpu.iota {dimensions = array<i32: 0>} : vector<7x128xi32>
    %c0_2 = arith.constant 0 : index
    %c0_3 = arith.constant 0 : index
    %c0_4 = arith.constant 0 : index
    %c0_5 = arith.constant 0 : index
    %8 = vector.load %arg1[%c0_2, %c0_3, %c0_4, %c0_5] : memref<1x3x21x128xf32, #tpu.memory_space<vmem>>, vector<1x1x21x128xf32>
    %9 = vector.shape_cast %8 : vector<1x1x21x128xf32> to vector<21x128xf32>
    %10 = vector.extract_strided_slice %1 {offsets = [0, 0], sizes = [8, 1], strides = [1, 1]} : vector<8x21xf32> to vector<8x1xf32>
    %11 = vector.extract_strided_slice %9 {offsets = [0, 0], sizes = [1, 128], strides = [1, 1]} : vector<21x128xf32> to vector<1x128xf32>
    %12 = vector.broadcast %10 : vector<8x1xf32> to vector<8x128xf32>
    %13 = vector.broadcast %11 : vector<1x128xf32> to vector<8x128xf32>
    %14 = arith.subf %12, %13 : vector<8x128xf32>
    %15 = arith.mulf %14, %14 : vector<8x128xf32>
    %16 = vector.extract_strided_slice %1 {offsets = [0, 1], sizes = [8, 1], strides = [1, 1]} : vector<8x21xf32> to vector<8x1xf32>
    %17 = vector.extract_strided_slice %9 {offsets = [1, 0], sizes = [1, 128], strides = [1, 1]} : vector<21x128xf32> to vector<1x128xf32>
    %18 = vector.broadcast %16 : vector<8x1xf32> to vector<8x128xf32>
    %19 = vector.broadcast %17 : vector<1x128xf32> to vector<8x128xf32>
    %20 = arith.subf %18, %19 : vector<8x128xf32>
    %21 = arith.mulf %20, %20 : vector<8x128xf32>
    %22 = arith.addf %15, %21 : vector<8x128xf32>
    %23 = vector.extract_strided_slice %1 {offsets = [0, 2], sizes = [8, 1], strides = [1, 1]} : vector<8x21xf32> to vector<8x1xf32>
    %24 = vector.extract_strided_slice %9 {offsets = [2, 0], sizes = [1, 128], strides = [1, 1]} : vector<21x128xf32> to vector<1x128xf32>
    %25 = vector.broadcast %23 : vector<8x1xf32> to vector<8x128xf32>
    %26 = vector.broadcast %24 : vector<1x128xf32> to vector<8x128xf32>
    %27 = arith.subf %25, %26 : vector<8x128xf32>
    %28 = arith.mulf %27, %27 : vector<8x128xf32>
    %29 = arith.addf %22, %28 : vector<8x128xf32>
    %30 = math.sqrt %29 : vector<8x128xf32>
    %31 = vector.extract_strided_slice %1 {offsets = [0, 8], sizes = [8, 1], strides = [1, 1]} : vector<8x21xf32> to vector<8x1xf32>
    %32 = vector.extract_strided_slice %9 {offsets = [8, 0], sizes = [1, 128], strides = [1, 1]} : vector<21x128xf32> to vector<1x128xf32>
    %33 = vector.broadcast %31 : vector<8x1xf32> to vector<8x128xf32>
    %34 = vector.broadcast %32 : vector<1x128xf32> to vector<8x128xf32>
    %35 = arith.subf %33, %34 : vector<8x128xf32>
    %36 = arith.mulf %35, %35 : vector<8x128xf32>
    %37 = vector.extract_strided_slice %1 {offsets = [0, 9], sizes = [8, 1], strides = [1, 1]} : vector<8x21xf32> to vector<8x1xf32>
    %38 = vector.extract_strided_slice %9 {offsets = [9, 0], sizes = [1, 128], strides = [1, 1]} : vector<21x128xf32> to vector<1x128xf32>
    %39 = vector.broadcast %37 : vector<8x1xf32> to vector<8x128xf32>
    %40 = vector.broadcast %38 : vector<1x128xf32> to vector<8x128xf32>
    %41 = arith.subf %39, %40 : vector<8x128xf32>
    %42 = arith.mulf %41, %41 : vector<8x128xf32>
    %43 = arith.addf %36, %42 : vector<8x128xf32>
    %44 = vector.extract_strided_slice %1 {offsets = [0, 10], sizes = [8, 1], strides = [1, 1]} : vector<8x21xf32> to vector<8x1xf32>
    %45 = vector.extract_strided_slice %9 {offsets = [10, 0], sizes = [1, 128], strides = [1, 1]} : vector<21x128xf32> to vector<1x128xf32>
    %46 = vector.broadcast %44 : vector<8x1xf32> to vector<8x128xf32>
    %47 = vector.broadcast %45 : vector<1x128xf32> to vector<8x128xf32>
    %48 = arith.subf %46, %47 : vector<8x128xf32>
    %49 = arith.mulf %48, %48 : vector<8x128xf32>
    %50 = arith.addf %43, %49 : vector<8x128xf32>
    %51 = math.sqrt %50 : vector<8x128xf32>
    %52 = arith.addf %30, %51 : vector<8x128xf32>
    %cst_6 = arith.constant 0.000000e+00 : f32
    %53 = vector.broadcast %cst_6 : f32 to vector<8x128xf32>
    %54 = arith.subf %53, %52 : vector<8x128xf32>
    %cst_7 = arith.constant 9.99999997E-7 : f32
    %55 = vector.broadcast %cst_7 : f32 to vector<8x128xf32>
    %56 = arith.addf %51, %55 : vector<8x128xf32>
    %57 = arith.divf %54, %56 : vector<8x128xf32>
    %58 = math.exp %57 : vector<8x128xf32>
    %cst_8 = arith.constant 4.000000e-01 : f32
    %59 = vector.broadcast %cst_8 : f32 to vector<8x128xf32>
    %60 = arith.mulf %59, %58 : vector<8x128xf32>
    %61 = vector.extract_strided_slice %9 {offsets = [11, 0], sizes = [1, 128], strides = [1, 1]} : vector<21x128xf32> to vector<1x128xf32>
    %cst_9 = arith.constant 5.000000e-01 : f32
    %62 = vector.broadcast %cst_9 : f32 to vector<1x128xf32>
    %63 = arith.cmpf olt, %61, %62 : vector<1x128xf32>
    %cst_10 = arith.constant 5.000000e-01 : f32
    %64 = vector.broadcast %cst_10 : f32 to vector<8x128xf32>
    %65 = arith.mulf %60, %64 : vector<8x128xf32>
    %66 = vector.shape_cast %63 : vector<1x128xi1> to vector<1x128xi1>
    %67 = vector.broadcast %66 : vector<1x128xi1> to vector<8x128xi1>
    %68 = arith.select %67, %65, %60 : vector<8x128xi1>, vector<8x128xf32>
    %69 = vector.extract_strided_slice %9 {offsets = [14, 0], sizes = [7, 128], strides = [1, 1]} : vector<21x128xf32> to vector<7x128xf32>
    %cst_11 = arith.constant dense<0xFF800000> : vector<128xf32>
    %70 = vector.multi_reduction <maximumf>, %69, %cst_11 [0] : vector<7x128xf32> to vector<128xf32>
    %71 = vector.shape_cast %70 : vector<128xf32> to vector<1x128xf32>
    %72 = vector.broadcast %71 : vector<1x128xf32> to vector<7x128xf32>
    %73 = arith.cmpf oeq, %69, %72 : vector<7x128xf32>
    %c7_i32 = arith.constant 7 : i32
    %74 = vector.broadcast %c7_i32 : i32 to vector<7x128xi32>
    %75 = arith.select %73, %7, %74 : vector<7x128xi1>, vector<7x128xi32>
    %cst_12 = arith.constant dense<2147483647> : vector<128xi32>
    %76 = vector.multi_reduction <minsi>, %75, %cst_12 [0] : vector<7x128xi32> to vector<128xi32>
    %77 = vector.shape_cast %76 : vector<128xi32> to vector<1x128xi32>
    %78 = vector.broadcast %77 : vector<1x128xi32> to vector<7x128xi32>
    %79 = arith.cmpi eq, %7, %78 : vector<7x128xi32>
    %80 = arith.extui %79 : vector<7x128xi1> to vector<7x128xi32>
    %81 = arith.sitofp %80 : vector<7x128xi32> to vector<7x128xf32>
    %cst_13 = arith.constant dense<0.000000e+00> : vector<8x128xf32>
    %82 = tpu.matmul %6, %81, %cst_13 {dimension_numbers = #tpu.dot_dimension_numbers<[1], [0], [0], [1], [0, 0, 1, 1], [], []>} : vector<8x7xf32>, vector<7x128xf32>, vector<8x128xf32> -> vector<8x128xf32>
    %cst_14 = arith.constant 5.000000e-01 : f32
    %83 = vector.broadcast %cst_14 : f32 to vector<8x128xf32>
    %84 = arith.cmpf ogt, %82, %83 : vector<8x128xf32>
    %cst_15 = arith.constant 5.000000e-01 : f32
    %85 = vector.broadcast %cst_15 : f32 to vector<8x128xf32>
    %86 = arith.mulf %68, %85 : vector<8x128xf32>
    %87 = arith.select %84, %68, %86 : vector<8x128xi1>, vector<8x128xf32>
    %cst_16 = arith.constant 1.000000e+00 : f32
    %88 = vector.broadcast %cst_16 : f32 to vector<8x128xf32>
    %89 = arith.subf %88, %87 : vector<8x128xf32>
    %c0_17 = arith.constant 0 : index
    %c0_18 = arith.constant 0 : index
    %c0_19 = arith.constant 0 : index
    %c0_20 = arith.constant 0 : index
    %90 = vector.load %arg3[%c0_17, %c0_18, %c0_19, %c0_20] : memref<1x3x8x128xf32, #tpu.memory_space<vmem>>, vector<1x1x8x128xf32>
    %91 = vector.shape_cast %90 : vector<1x1x8x128xf32> to vector<8x128xf32>
    %92 = vector.shape_cast %89 : vector<8x128xf32> to vector<1x1x8x128xf32>
    tpu.vector_store %arg3[%c0_17, %c0_18, %c0_19, %c0_20], %92 {strides = array<i32>} : memref<1x3x8x128xf32, #tpu.memory_space<vmem>>, vector<1x1x8x128xf32>,
    %c0_21 = arith.constant 0 : index
    %c1 = arith.constant 1 : index
    %c0_22 = arith.constant 0 : index
    %c0_23 = arith.constant 0 : index
    %93 = vector.load %arg1[%c0_21, %c1, %c0_22, %c0_23] : memref<1x3x21x128xf32, #tpu.memory_space<vmem>>, vector<1x1x21x128xf32>
    %94 = vector.shape_cast %93 : vector<1x1x21x128xf32> to vector<21x128xf32>
    %95 = vector.extract_strided_slice %1 {offsets = [0, 0], sizes = [8, 1], strides = [1, 1]} : vector<8x21xf32> to vector<8x1xf32>
    %96 = vector.extract_strided_slice %94 {offsets = [0, 0], sizes = [1, 128], strides = [1, 1]} : vector<21x128xf32> to vector<1x128xf32>
    %97 = vector.broadcast %95 : vector<8x1xf32> to vector<8x128xf32>
    %98 = vector.broadcast %96 : vector<1x128xf32> to vector<8x128xf32>
    %99 = arith.subf %97, %98 : vector<8x128xf32>
    %100 = arith.mulf %99, %99 : vector<8x128xf32>
    %101 = vector.extract_strided_slice %1 {offsets = [0, 1], sizes = [8, 1], strides = [1, 1]} : vector<8x21xf32> to vector<8x1xf32>
    %102 = vector.extract_strided_slice %94 {offsets = [1, 0], sizes = [1, 128], strides = [1, 1]} : vector<21x128xf32> to vector<1x128xf32>
    %103 = vector.broadcast %101 : vector<8x1xf32> to vector<8x128xf32>
    %104 = vector.broadcast %102 : vector<1x128xf32> to vector<8x128xf32>
    %105 = arith.subf %103, %104 : vector<8x128xf32>
    %106 = arith.mulf %105, %105 : vector<8x128xf32>
    %107 = arith.addf %100, %106 : vector<8x128xf32>
    %108 = vector.extract_strided_slice %1 {offsets = [0, 2], sizes = [8, 1], strides = [1, 1]} : vector<8x21xf32> to vector<8x1xf32>
    %109 = vector.extract_strided_slice %94 {offsets = [2, 0], sizes = [1, 128], strides = [1, 1]} : vector<21x128xf32> to vector<1x128xf32>
    %110 = vector.broadcast %108 : vector<8x1xf32> to vector<8x128xf32>
    %111 = vector.broadcast %109 : vector<1x128xf32> to vector<8x128xf32>
    %112 = arith.subf %110, %111 : vector<8x128xf32>
    %113 = arith.mulf %112, %112 : vector<8x128xf32>
    %114 = arith.addf %107, %113 : vector<8x128xf32>
    %115 = math.sqrt %114 : vector<8x128xf32>
    %116 = vector.extract_strided_slice %1 {offsets = [0, 8], sizes = [8, 1], strides = [1, 1]} : vector<8x21xf32> to vector<8x1xf32>
    %117 = vector.extract_strided_slice %94 {offsets = [8, 0], sizes = [1, 128], strides = [1, 1]} : vector<21x128xf32> to vector<1x128xf32>
    %118 = vector.broadcast %116 : vector<8x1xf32> to vector<8x128xf32>
    %119 = vector.broadcast %117 : vector<1x128xf32> to vector<8x128xf32>
    %120 = arith.subf %118, %119 : vector<8x128xf32>
    %121 = arith.mulf %120, %120 : vector<8x128xf32>
    %122 = vector.extract_strided_slice %1 {offsets = [0, 9], sizes = [8, 1], strides = [1, 1]} : vector<8x21xf32> to vector<8x1xf32>
    %123 = vector.extract_strided_slice %94 {offsets = [9, 0], sizes = [1, 128], strides = [1, 1]} : vector<21x128xf32> to vector<1x128xf32>
    %124 = vector.broadcast %122 : vector<8x1xf32> to vector<8x128xf32>
    %125 = vector.broadcast %123 : vector<1x128xf32> to vector<8x128xf32>
    %126 = arith.subf %124, %125 : vector<8x128xf32>
    %127 = arith.mulf %126, %126 : vector<8x128xf32>
    %128 = arith.addf %121, %127 : vector<8x128xf32>
    %129 = vector.extract_strided_slice %1 {offsets = [0, 10], sizes = [8, 1], strides = [1, 1]} : vector<8x21xf32> to vector<8x1xf32>
    %130 = vector.extract_strided_slice %94 {offsets = [10, 0], sizes = [1, 128], strides = [1, 1]} : vector<21x128xf32> to vector<1x128xf32>
    %131 = vector.broadcast %129 : vector<8x1xf32> to vector<8x128xf32>
    %132 = vector.broadcast %130 : vector<1x128xf32> to vector<8x128xf32>
    %133 = arith.subf %131, %132 : vector<8x128xf32>
    %134 = arith.mulf %133, %133 : vector<8x128xf32>
    %135 = arith.addf %128, %134 : vector<8x128xf32>
    %136 = math.sqrt %135 : vector<8x128xf32>
    %137 = arith.addf %115, %136 : vector<8x128xf32>
    %cst_24 = arith.constant 0.000000e+00 : f32
    %138 = vector.broadcast %cst_24 : f32 to vector<8x128xf32>
    %139 = arith.subf %138, %137 : vector<8x128xf32>
    %cst_25 = arith.constant 9.99999997E-7 : f32
    %140 = vector.broadcast %cst_25 : f32 to vector<8x128xf32>
    %141 = arith.addf %136, %140 : vector<8x128xf32>
    %142 = arith.divf %139, %141 : vector<8x128xf32>
    %143 = math.exp %142 : vector<8x128xf32>
    %cst_26 = arith.constant 4.000000e-01 : f32
    %144 = vector.broadcast %cst_26 : f32 to vector<8x128xf32>
    %145 = arith.mulf %144, %143 : vector<8x128xf32>
    %146 = vector.extract_strided_slice %94 {offsets = [11, 0], sizes = [1, 128], strides = [1, 1]} : vector<21x128xf32> to vector<1x128xf32>
    %cst_27 = arith.constant 5.000000e-01 : f32
    %147 = vector.broadcast %cst_27 : f32 to vector<1x128xf32>
    %148 = arith.cmpf olt, %146, %147 : vector<1x128xf32>
    %cst_28 = arith.constant 5.000000e-01 : f32
    %149 = vector.broadcast %cst_28 : f32 to vector<8x128xf32>
    %150 = arith.mulf %145, %149 : vector<8x128xf32>
    %151 = vector.shape_cast %148 : vector<1x128xi1> to vector<1x128xi1>
    %152 = vector.broadcast %151 : vector<1x128xi1> to vector<8x128xi1>
    %153 = arith.select %152, %150, %145 : vector<8x128xi1>, vector<8x128xf32>
    %154 = vector.extract_strided_slice %94 {offsets = [14, 0], sizes = [7, 128], strides = [1, 1]} : vector<21x128xf32> to vector<7x128xf32>
    %cst_29 = arith.constant dense<0xFF800000> : vector<128xf32>
    %155 = vector.multi_reduction <maximumf>, %154, %cst_29 [0] : vector<7x128xf32> to vector<128xf32>
    %156 = vector.shape_cast %155 : vector<128xf32> to vector<1x128xf32>
    %157 = vector.broadcast %156 : vector<1x128xf32> to vector<7x128xf32>
    %158 = arith.cmpf oeq, %154, %157 : vector<7x128xf32>
    %c7_i32_30 = arith.constant 7 : i32
    %159 = vector.broadcast %c7_i32_30 : i32 to vector<7x128xi32>
    %160 = arith.select %158, %7, %159 : vector<7x128xi1>, vector<7x128xi32>
    %cst_31 = arith.constant dense<2147483647> : vector<128xi32>
    %161 = vector.multi_reduction <minsi>, %160, %cst_31 [0] : vector<7x128xi32> to vector<128xi32>
    %162 = vector.shape_cast %161 : vector<128xi32> to vector<1x128xi32>
    %163 = vector.broadcast %162 : vector<1x128xi32> to vector<7x128xi32>
    %164 = arith.cmpi eq, %7, %163 : vector<7x128xi32>
    %165 = arith.extui %164 : vector<7x128xi1> to vector<7x128xi32>
    %166 = arith.sitofp %165 : vector<7x128xi32> to vector<7x128xf32>
    %cst_32 = arith.constant dense<0.000000e+00> : vector<8x128xf32>
    %167 = tpu.matmul %6, %166, %cst_32 {dimension_numbers = #tpu.dot_dimension_numbers<[1], [0], [0], [1], [0, 0, 1, 1], [], []>} : vector<8x7xf32>, vector<7x128xf32>, vector<8x128xf32> -> vector<8x128xf32>
    %cst_33 = arith.constant 5.000000e-01 : f32
    %168 = vector.broadcast %cst_33 : f32 to vector<8x128xf32>
    %169 = arith.cmpf ogt, %167, %168 : vector<8x128xf32>
    %cst_34 = arith.constant 5.000000e-01 : f32
    %170 = vector.broadcast %cst_34 : f32 to vector<8x128xf32>
    %171 = arith.mulf %153, %170 : vector<8x128xf32>
    %172 = arith.select %169, %153, %171 : vector<8x128xi1>, vector<8x128xf32>
    %cst_35 = arith.constant 1.000000e+00 : f32
    %173 = vector.broadcast %cst_35 : f32 to vector<8x128xf32>
    %174 = arith.subf %173, %172 : vector<8x128xf32>
    %c0_36 = arith.constant 0 : index
    %c1_37 = arith.constant 1 : index
    %c0_38 = arith.constant 0 : index
    %c0_39 = arith.constant 0 : index
    %175 = vector.load %arg3[%c0_36, %c1_37, %c0_38, %c0_39] : memref<1x3x8x128xf32, #tpu.memory_space<vmem>>, vector<1x1x8x128xf32>
    %176 = vector.shape_cast %175 : vector<1x1x8x128xf32> to vector<8x128xf32>
    %177 = vector.shape_cast %174 : vector<8x128xf32> to vector<1x1x8x128xf32>
    tpu.vector_store %arg3[%c0_36, %c1_37, %c0_38, %c0_39], %177 {strides = array<i32>} : memref<1x3x8x128xf32, #tpu.memory_space<vmem>>, vector<1x1x8x128xf32>,
    %c0_40 = arith.constant 0 : index
    %c2 = arith.constant 2 : index
    %c0_41 = arith.constant 0 : index
    %c0_42 = arith.constant 0 : index
    %178 = vector.load %arg1[%c0_40, %c2, %c0_41, %c0_42] : memref<1x3x21x128xf32, #tpu.memory_space<vmem>>, vector<1x1x21x128xf32>
    %179 = vector.shape_cast %178 : vector<1x1x21x128xf32> to vector<21x128xf32>
    %180 = vector.extract_strided_slice %1 {offsets = [0, 0], sizes = [8, 1], strides = [1, 1]} : vector<8x21xf32> to vector<8x1xf32>
    %181 = vector.extract_strided_slice %179 {offsets = [0, 0], sizes = [1, 128], strides = [1, 1]} : vector<21x128xf32> to vector<1x128xf32>
    %182 = vector.broadcast %180 : vector<8x1xf32> to vector<8x128xf32>
    %183 = vector.broadcast %181 : vector<1x128xf32> to vector<8x128xf32>
    %184 = arith.subf %182, %183 : vector<8x128xf32>
    %185 = arith.mulf %184, %184 : vector<8x128xf32>
    %186 = vector.extract_strided_slice %1 {offsets = [0, 1], sizes = [8, 1], strides = [1, 1]} : vector<8x21xf32> to vector<8x1xf32>
    %187 = vector.extract_strided_slice %179 {offsets = [1, 0], sizes = [1, 128], strides = [1, 1]} : vector<21x128xf32> to vector<1x128xf32>
    %188 = vector.broadcast %186 : vector<8x1xf32> to vector<8x128xf32>
    %189 = vector.broadcast %187 : vector<1x128xf32> to vector<8x128xf32>
    %190 = arith.subf %188, %189 : vector<8x128xf32>
    %191 = arith.mulf %190, %190 : vector<8x128xf32>
    %192 = arith.addf %185, %191 : vector<8x128xf32>
    %193 = vector.extract_strided_slice %1 {offsets = [0, 2], sizes = [8, 1], strides = [1, 1]} : vector<8x21xf32> to vector<8x1xf32>
    %194 = vector.extract_strided_slice %179 {offsets = [2, 0], sizes = [1, 128], strides = [1, 1]} : vector<21x128xf32> to vector<1x128xf32>
    %195 = vector.broadcast %193 : vector<8x1xf32> to vector<8x128xf32>
    %196 = vector.broadcast %194 : vector<1x128xf32> to vector<8x128xf32>
    %197 = arith.subf %195, %196 : vector<8x128xf32>
    %198 = arith.mulf %197, %197 : vector<8x128xf32>
    %199 = arith.addf %192, %198 : vector<8x128xf32>
    %200 = math.sqrt %199 : vector<8x128xf32>
    %201 = vector.extract_strided_slice %1 {offsets = [0, 8], sizes = [8, 1], strides = [1, 1]} : vector<8x21xf32> to vector<8x1xf32>
    %202 = vector.extract_strided_slice %179 {offsets = [8, 0], sizes = [1, 128], strides = [1, 1]} : vector<21x128xf32> to vector<1x128xf32>
    %203 = vector.broadcast %201 : vector<8x1xf32> to vector<8x128xf32>
    %204 = vector.broadcast %202 : vector<1x128xf32> to vector<8x128xf32>
    %205 = arith.subf %203, %204 : vector<8x128xf32>
    %206 = arith.mulf %205, %205 : vector<8x128xf32>
    %207 = vector.extract_strided_slice %1 {offsets = [0, 9], sizes = [8, 1], strides = [1, 1]} : vector<8x21xf32> to vector<8x1xf32>
    %208 = vector.extract_strided_slice %179 {offsets = [9, 0], sizes = [1, 128], strides = [1, 1]} : vector<21x128xf32> to vector<1x128xf32>
    %209 = vector.broadcast %207 : vector<8x1xf32> to vector<8x128xf32>
    %210 = vector.broadcast %208 : vector<1x128xf32> to vector<8x128xf32>
    %211 = arith.subf %209, %210 : vector<8x128xf32>
    %212 = arith.mulf %211, %211 : vector<8x128xf32>
    %213 = arith.addf %206, %212 : vector<8x128xf32>
    %214 = vector.extract_strided_slice %1 {offsets = [0, 10], sizes = [8, 1], strides = [1, 1]} : vector<8x21xf32> to vector<8x1xf32>
    %215 = vector.extract_strided_slice %179 {offsets = [10, 0], sizes = [1, 128], strides = [1, 1]} : vector<21x128xf32> to vector<1x128xf32>
    %216 = vector.broadcast %214 : vector<8x1xf32> to vector<8x128xf32>
    %217 = vector.broadcast %215 : vector<1x128xf32> to vector<8x128xf32>
    %218 = arith.subf %216, %217 : vector<8x128xf32>
    %219 = arith.mulf %218, %218 : vector<8x128xf32>
    %220 = arith.addf %213, %219 : vector<8x128xf32>
    %221 = math.sqrt %220 : vector<8x128xf32>
    %222 = arith.addf %200, %221 : vector<8x128xf32>
    %cst_43 = arith.constant 0.000000e+00 : f32
    %223 = vector.broadcast %cst_43 : f32 to vector<8x128xf32>
    %224 = arith.subf %223, %222 : vector<8x128xf32>
    %cst_44 = arith.constant 9.99999997E-7 : f32
    %225 = vector.broadcast %cst_44 : f32 to vector<8x128xf32>
    %226 = arith.addf %221, %225 : vector<8x128xf32>
    %227 = arith.divf %224, %226 : vector<8x128xf32>
    %228 = math.exp %227 : vector<8x128xf32>
    %cst_45 = arith.constant 4.000000e-01 : f32
    %229 = vector.broadcast %cst_45 : f32 to vector<8x128xf32>
    %230 = arith.mulf %229, %228 : vector<8x128xf32>
    %231 = vector.extract_strided_slice %179 {offsets = [11, 0], sizes = [1, 128], strides = [1, 1]} : vector<21x128xf32> to vector<1x128xf32>
    %cst_46 = arith.constant 5.000000e-01 : f32
    %232 = vector.broadcast %cst_46 : f32 to vector<1x128xf32>
    %233 = arith.cmpf olt, %231, %232 : vector<1x128xf32>
    %cst_47 = arith.constant 5.000000e-01 : f32
    %234 = vector.broadcast %cst_47 : f32 to vector<8x128xf32>
    %235 = arith.mulf %230, %234 : vector<8x128xf32>
    %236 = vector.shape_cast %233 : vector<1x128xi1> to vector<1x128xi1>
    %237 = vector.broadcast %236 : vector<1x128xi1> to vector<8x128xi1>
    %238 = arith.select %237, %235, %230 : vector<8x128xi1>, vector<8x128xf32>
    %239 = vector.extract_strided_slice %179 {offsets = [14, 0], sizes = [7, 128], strides = [1, 1]} : vector<21x128xf32> to vector<7x128xf32>
    %cst_48 = arith.constant dense<0xFF800000> : vector<128xf32>
    %240 = vector.multi_reduction <maximumf>, %239, %cst_48 [0] : vector<7x128xf32> to vector<128xf32>
    %241 = vector.shape_cast %240 : vector<128xf32> to vector<1x128xf32>
    %242 = vector.broadcast %241 : vector<1x128xf32> to vector<7x128xf32>
    %243 = arith.cmpf oeq, %239, %242 : vector<7x128xf32>
    %c7_i32_49 = arith.constant 7 : i32
    %244 = vector.broadcast %c7_i32_49 : i32 to vector<7x128xi32>
    %245 = arith.select %243, %7, %244 : vector<7x128xi1>, vector<7x128xi32>
    %cst_50 = arith.constant dense<2147483647> : vector<128xi32>
    %246 = vector.multi_reduction <minsi>, %245, %cst_50 [0] : vector<7x128xi32> to vector<128xi32>
    %247 = vector.shape_cast %246 : vector<128xi32> to vector<1x128xi32>
    %248 = vector.broadcast %247 : vector<1x128xi32> to vector<7x128xi32>
    %249 = arith.cmpi eq, %7, %248 : vector<7x128xi32>
    %250 = arith.extui %249 : vector<7x128xi1> to vector<7x128xi32>
    %251 = arith.sitofp %250 : vector<7x128xi32> to vector<7x128xf32>
    %cst_51 = arith.constant dense<0.000000e+00> : vector<8x128xf32>
    %252 = tpu.matmul %6, %251, %cst_51 {dimension_numbers = #tpu.dot_dimension_numbers<[1], [0], [0], [1], [0, 0, 1, 1], [], []>} : vector<8x7xf32>, vector<7x128xf32>, vector<8x128xf32> -> vector<8x128xf32>
    %cst_52 = arith.constant 5.000000e-01 : f32
    %253 = vector.broadcast %cst_52 : f32 to vector<8x128xf32>
    %254 = arith.cmpf ogt, %252, %253 : vector<8x128xf32>
    %cst_53 = arith.constant 5.000000e-01 : f32
    %255 = vector.broadcast %cst_53 : f32 to vector<8x128xf32>
    %256 = arith.mulf %238, %255 : vector<8x128xf32>
    %257 = arith.select %254, %238, %256 : vector<8x128xi1>, vector<8x128xf32>
    %cst_54 = arith.constant 1.000000e+00 : f32
    %258 = vector.broadcast %cst_54 : f32 to vector<8x128xf32>
    %259 = arith.subf %258, %257 : vector<8x128xf32>
    %c0_55 = arith.constant 0 : index
    %c2_56 = arith.constant 2 : index
    %c0_57 = arith.constant 0 : index
    %c0_58 = arith.constant 0 : index
    %260 = vector.load %arg3[%c0_55, %c2_56, %c0_57, %c0_58] : memref<1x3x8x128xf32, #tpu.memory_space<vmem>>, vector<1x1x8x128xf32>
    %261 = vector.shape_cast %260 : vector<1x1x8x128xf32> to vector<8x128xf32>
    %262 = vector.shape_cast %259 : vector<8x128xf32> to vector<1x1x8x128xf32>
    tpu.vector_store %arg3[%c0_55, %c2_56, %c0_57, %c0_58], %262 {strides = array<i32>} : memref<1x3x8x128xf32, #tpu.memory_space<vmem>>, vector<1x1x8x128xf32>,
    return
  }
  func.func @transform_0(%arg0: i32) -> (i32, i32, i32, i32) {
    %c0_i32 = arith.constant 0 : i32
    %c0_i32_0 = arith.constant 0 : i32
    %c0_i32_1 = arith.constant 0 : i32
    %c0_i32_2 = arith.constant 0 : i32
    return %arg0, %c0_i32, %c0_i32_0, %c0_i32_1 : i32, i32, i32, i32
  }
  func.func @transform_1(%arg0: i32) -> (i32, i32, i32) {
    %c0_i32 = arith.constant 0 : i32
    %c0_i32_0 = arith.constant 0 : i32
    %c0_i32_1 = arith.constant 0 : i32
    return %arg0, %c0_i32, %c0_i32_0 : i32, i32, i32
  }
  func.func @transform_2(%arg0: i32) -> (i32, i32, i32, i32) {
    %c0_i32 = arith.constant 0 : i32
    %c0_i32_0 = arith.constant 0 : i32
    %c0_i32_1 = arith.constant 0 : i32
    %c0_i32_2 = arith.constant 0 : i32
    return %arg0, %c0_i32, %c0_i32_0, %c0_i32_1 : i32, i32, i32, i32
  }
}

</mosaic_0001>

<llo_original>
// kernel: tpu_custom_call.1
$region0: #{tpu_custom_call.1}
  #allocation0 [shape = 'u32[]', space=smem, size = 0x4, offset = 0x4, fixed_abs, tag = 'smem constant byte address 0x4 - core index']
  #allocation1 [shape = 'u32[144,128]{1,0:T(1,128)}', space=vmem, size = 0x12000, scoped, tag = 'internal scratch']
  %s0 = inlined_call_operand.vmem [shape: f32[2,3,21,128], index: 0, kind: input, shape index: {}]
  %s1 = inlined_call_operand.vmem [shape: f32[2,8,21], index: 1, kind: input, shape index: {}]
  %s2 = inlined_call_operand.hbm [shape: f32[2,3,8,128], index: 2, kind: output, shape index: {}]
  %s3 = sld [smem:[#allocation0]]
  $region41: #{tpu_custom_call.1} parent=0
    _
  %s5 = ssub.s32 1, %s3
  %s6 = scalar_select 0, %s5, %s3
  $region1: #{tpu_custom_call.1} parent=0
    #allocation2 [shape = 'u8[24576]{0}', space=vmem, size = 0x6000, scoped, tag = 'output window, operand 0']
    #allocation3 [shape = 's32[2]{0}', space=sflag, size = 0x8, scoped, tag = 'scoped memory for tpu_custom_call.1']
    %7 = vsyncpa [#allocation3], 0
    %s8 = scalar_lea.sflag [#allocation3], 1
    %9 = vsyncpa %s8, 0
    loop: start=0, step=1, limit=4
    $region2: #{tpu_custom_call.1} parent=1 // loop_pre_header
      _
    $region3: #{tpu_custom_call.1} parent=1 // loop_header
      %s11 = sphi 0, %s15
      %p12 = scmp.ge.s32.totalorder %s11, 4
      %s21 = sphi 0, %s23
      %s24 = sphi 0, %s21
      %s25 = sphi 0, %s24
      %s41 = sphi 0, %s25
      %s47 = sphi 0, %s49
      %s50 = sphi 0, %s47
      %s51 = sphi 0, %s50
      %s67 = sphi 0, %s51
      %s73 = sphi 0, %s75
      %s76 = sphi 0, %s73
      %s77 = sphi 0, %s76
      %s93 = sphi 0, %s77
    $region4: #{tpu_custom_call.1} parent=1 // loop_header_branch
      %14 = sbr.rel (%p12) target = $region8
    $region5: #{tpu_custom_call.1} parent=1 // loop_body
      %s16 = ssub.s32 %s11, 1
      %s17 = ssub.s32 %s11, 2
      %s18 = sadd.s32 %s11, 1
      %s19 = ssub.s32 %s11, %s18
      %p20 = scmp.eq.s32.totalorder %s19, 0
      %s22 = sadd.s32 %s21, 1
      %s23 = scalar_select %p20, %s21, %s22
      %p26 = pneg %p20
      %p27 = scmp.eq.s32.totalorder %s11, 1
      %p28 = por %p26, %p27
      %p29 = scmp.ne.s32.totalorder %s21, %s24
      %p30 = scmp.eq.s32.totalorder %s11, 0
      %p31 = por %p29, %p30
      %p32 = scmp.ne.s32.totalorder %s21, %s24
      %p33 = scmp.eq.s32.totalorder %s16, 1
      %p34 = por %p32, %p33
      %p35 = scmp.ne.s32.totalorder %s24, %s25
      %p36 = scmp.eq.s32.totalorder %s16, 0
      %p37 = por %p35, %p36
      %p38 = scmp.ne.s32.totalorder %s24, %s25
      %p39 = scmp.eq.s32.totalorder %s17, 1
      %p40 = por %p38, %p39
      %p42 = scmp.ne.s32.totalorder %s25, %s41
      %p43 = scmp.eq.s32.totalorder %s17, 0
      %p44 = por %p42, %p43
      %s45 = ssub.s32 %s11, %s18
      %p46 = scmp.eq.s32.totalorder %s45, 0
      %s48 = sadd.s32 %s47, 1
      %s49 = scalar_select %p46, %s47, %s48
      %p52 = pneg %p46
      %p53 = scmp.eq.s32.totalorder %s11, 1
      %p54 = por %p52, %p53
      %p55 = scmp.ne.s32.totalorder %s47, %s50
      %p56 = scmp.eq.s32.totalorder %s11, 0
      %p57 = por %p55, %p56
      %p58 = scmp.ne.s32.totalorder %s47, %s50
      %p59 = scmp.eq.s32.totalorder %s16, 1
      %p60 = por %p58, %p59
      %p61 = scmp.ne.s32.totalorder %s50, %s51
      %p62 = scmp.eq.s32.totalorder %s16, 0
      %p63 = por %p61, %p62
      %p64 = scmp.ne.s32.totalorder %s50, %s51
      %p65 = scmp.eq.s32.totalorder %s17, 1
      %p66 = por %p64, %p65
      %p68 = scmp.ne.s32.totalorder %s51, %s67
      %p69 = scmp.eq.s32.totalorder %s17, 0
      %p70 = por %p68, %p69
      %s71 = ssub.s32 %s11, %s18
      %p72 = scmp.eq.s32.totalorder %s71, 0
      %s74 = sadd.s32 %s73, 1
      %s75 = scalar_select %p72, %s73, %s74
      %p78 = pneg %p72
      %p79 = scmp.eq.s32.totalorder %s11, 1
      %p80 = por %p78, %p79
      %p81 = scmp.ne.s32.totalorder %s73, %s76
      %p82 = scmp.eq.s32.totalorder %s11, 0
      %p83 = por %p81, %p82
      %p84 = scmp.ne.s32.totalorder %s73, %s76
      %p85 = scmp.eq.s32.totalorder %s16, 1
      %p86 = por %p84, %p85
      %p87 = scmp.ne.s32.totalorder %s76, %s77
      %p88 = scmp.eq.s32.totalorder %s16, 0
      %p89 = por %p87, %p88
      %p90 = scmp.ne.s32.totalorder %s76, %s77
      %p91 = scmp.eq.s32.totalorder %s17, 1
      %p92 = por %p90, %p91
      %p94 = scmp.ne.s32.totalorder %s77, %s93
      %p95 = scmp.eq.s32.totalorder %s17, 0
      %p96 = por %p94, %p95
      %p97 = scmp.le.s32.totalorder 1, %s11
      %p98 = scmp.lt.s32.totalorder %s11, 3
      %p99 = pnand %p97, %p98
      %p100 = pneg %p99
      // Predicated region
      $region9: #{tpu_custom_call.1} parent=5 // pred_check
        _
      $region10: #{tpu_custom_call.1} parent=5 // pred_check_branch
        %102 = sbr.rel (%p99) target = $region12
      $region11: #{tpu_custom_call.1} parent=5 // pred_region
        %s103 = ssub.s32 %s11, 1
      $region12: #{tpu_custom_call.1} parent=5 // pred_fallthru
        _
      %p104 = scmp.lt.s32.totalorder %s11, 2
      // Predicated region
      $region13: #{tpu_custom_call.1} parent=5 // pred_check
        %p105 = pneg %p104
      $region14: #{tpu_custom_call.1} parent=5 // pred_check_branch
        %107 = sbr.rel (%p105) target = $region16
      $region15: #{tpu_custom_call.1} parent=5 // pred_region
        // Predicated region
        $region17: #{tpu_custom_call.1} parent=15 // pred_check
          %p108 = pneg %p31
        $region18: #{tpu_custom_call.1} parent=15 // pred_check_branch
          %110 = sbr.rel (%p108) target = $region20
        $region19: #{tpu_custom_call.1} parent=15 // pred_region
          %p111 = scmp.lt.s32.totalorder %s11, 1
          %s112 = scalar_select %p111, %s11, 1
          %s113 = smul.addr %s112, 9
          %s114 = smul.addr %s113, 8
          %s115 = scalar_lea.vmem %s0, %s114
        $region20: #{tpu_custom_call.1} parent=15 // pred_fallthru
          _
        // Predicated region
        $region21: #{tpu_custom_call.1} parent=15 // pred_check
          %p116 = pneg %p57
        $region22: #{tpu_custom_call.1} parent=15 // pred_check_branch
          %118 = sbr.rel (%p116) target = $region24
        $region23: #{tpu_custom_call.1} parent=15 // pred_region
          %p119 = scmp.lt.s32.totalorder %s11, 1
          %s120 = scalar_select %p119, %s11, 1
          %s121 = smul.addr %s120, 8
          %s122 = scalar_lea.vmem %s1, %s121
        $region24: #{tpu_custom_call.1} parent=15 // pred_fallthru
          _
      $region16: #{tpu_custom_call.1} parent=5 // pred_fallthru
        _
      %p123 = scmp.le.s32.totalorder 1, %s11
      %p124 = scmp.lt.s32.totalorder %s11, 3
      %p125 = pnand %p123, %p124
      %p126 = pneg %p125
      // Predicated region
      $region25: #{tpu_custom_call.1} parent=5 // pred_check
        _
      $region26: #{tpu_custom_call.1} parent=5 // pred_check_branch
        %128 = sbr.rel (%p125) target = $region28
      $region27: #{tpu_custom_call.1} parent=5 // pred_region
        %s129 = ssub.s32 %s11, 1
        %p130 = scmp.lt.s32.totalorder %s16, 1
        %s131 = scalar_select %p130, %s16, 1
        %s132 = smul.addr %s131, 9
        %s133 = smul.addr %s132, 8
        %s134 = scalar_lea.vmem %s0, %s133
        %p135 = pneg %p37
        %p136 = pneg %p34
        %p137 = scmp.lt.s32.totalorder %s16, 1
        %s138 = scalar_select %p137, %s16, 1
        %s139 = smul.addr %s138, 8
        %s140 = scalar_lea.vmem %s1, %s139
        %p141 = pneg %p63
        %p142 = pneg %p60
        %p143 = pneg %p89
        %p144 = pneg %p86
        %s145 = sand.u32 %s76, 1
        %s146 = scalar_lea.sflag [#allocation3], %s145
        %s147 = sand.u32 %s76, 1
        %s148 = smul.addr %s147, 24
        %s149 = scalar_lea.vmem [#allocation2], %s148
        %p150 = scmp.lt.s32.totalorder %s16, 1
        %s151 = scalar_select %p150, %s16, 1
        %s152 = smul.addr %s151, 9
        %s153 = smul.addr %s152, 8
        %s154 = scalar_lea.vmem %s0, %s153
        %p155 = scmp.lt.s32.totalorder %s16, 1
        %s156 = scalar_select %p155, %s16, 1
        %s157 = smul.addr %s156, 8
        %s158 = scalar_lea.vmem %s1, %s157
        %v159 = vld [vmem:[%s158] sm:$0xff]
        %vm160 = vcmp.eq.f32.partialorder %v159, 1.0
        %v161 = vsel %vm160, 1, 0
        %v162 = vcvt.s32.f32 %v161
        %v163 = vlaneseq
        %v164 = vshrl.u32 %v163, 7
        %v165 = vld [vmem:[%s154] sm:$0xff]
        %v166 = vld [vmem:[%s154 + $0x8] sm:$0xff]
        %v167 = vld [vmem:[%s154 + $0x10] sm:$0x1f]
        %169 = vset.pattern.permute.xlu0 0
        %170 = vperm.xlu0 %169, %v159
        %v171 = vpop.permute.xlu0 %170
        %v173 = vlaneseq
        %v174 = vshrl.u32 %v173, 7
        %v175 = vsub.s32 0, %v174
        %v176 = vrot.slane %v165, %v175
        %v177 = vsub.f32 %v171, %v176
        %v178 = vmul.f32 %v177, %v177
        %179 = vset.pattern.permute.xlu0 1
        %180 = vperm.xlu0 %179, %v159
        %v181 = vpop.permute.xlu0 %180
        %v183 = vlaneseq
        %v184 = vshrl.u32 %v183, 7
        %v185 = vsub.s32 1, %v184
        %v186 = vrot.slane %v165, %v185
        %v187 = vsub.f32 %v181, %v186
        %v188 = vmul.f32 %v187, %v187
        %v189 = vadd.f32 %v178, %v188
        %190 = vset.pattern.permute.xlu0 2
        %191 = vperm.xlu0 %190, %v159
        %v192 = vpop.permute.xlu0 %191
        %v194 = vlaneseq
        %v195 = vshrl.u32 %v194, 7
        %v196 = vsub.s32 2, %v195
        %v197 = vrot.slane %v165, %v196
        %v198 = vsub.f32 %v192, %v197
        %v199 = vmul.f32 %v198, %v198
        %v200 = vadd.f32 %v189, %v199
        %v201 = vrsqrt.pop %v200
        %v202 = vmul.f32 %v200, %v201
        %vm203 = vcmp.eq.f32.partialorder %v200, inf
        %v204 = vsel %vm203, %v200, %v202
        %vm205 = vcmp.eq.f32.partialorder %v200, 0.0
        %v206 = vand.u32 %v200, 2147483648
        %v207 = vsel %vm205, %v206, %v204
        %208 = vset.pattern.permute.xlu0 8
        %209 = vperm.xlu0 %208, %v159
        %v210 = vpop.permute.xlu0 %209
        %v212 = vlaneseq
        %v213 = vshrl.u32 %v212, 7
        %v214 = vsub.s32 0, %v213
        %v215 = vrot.slane %v166, %v214
        %v216 = vsub.f32 %v210, %v215
        %v217 = vmul.f32 %v216, %v216
        %218 = vset.pattern.permute.xlu0 9
        %219 = vperm.xlu0 %218, %v159
        %v220 = vpop.permute.xlu0 %219
        %v222 = vlaneseq
        %v223 = vshrl.u32 %v222, 7
        %v224 = vsub.s32 1, %v223
        %v225 = vrot.slane %v166, %v224
        %v226 = vsub.f32 %v220, %v225
        %v227 = vmul.f32 %v226, %v226
        %v228 = vadd.f32 %v217, %v227
        %229 = vset.pattern.permute.xlu0 10
        %230 = vperm.xlu0 %229, %v159
        %v231 = vpop.permute.xlu0 %230
        %v233 = vlaneseq
        %v234 = vshrl.u32 %v233, 7
        %v235 = vsub.s32 2, %v234
        %v236 = vrot.slane %v166, %v235
        %v237 = vsub.f32 %v231, %v236
        %v238 = vmul.f32 %v237, %v237
        %v239 = vadd.f32 %v228, %v238
        %v240 = vrsqrt.pop %v239
        %v241 = vmul.f32 %v239, %v240
        %vm242 = vcmp.eq.f32.partialorder %v239, inf
        %v243 = vsel %vm242, %v239, %v241
        %vm244 = vcmp.eq.f32.partialorder %v239, 0.0
        %v245 = vand.u32 %v239, 2147483648
        %v246 = vsel %vm244, %v245, %v243
        %v247 = vadd.f32 %v207, %v246
        %v248 = vsub.f32 0.0, %v247
        %v249 = vadd.f32 %v246, 1e-06
        %v250 = vrcp.pop %v249
        %v251 = vmul.f32 %v248, %v250
        %v252 = vmul.f32 %v251, 1.442695
        %v253 = vpow.pop %v252
        %v254 = vmul.f32 %v253, 0.4
        %vm255 = vcmp.lt.f32.partialorder %v166, 0.5
        %v256 = vmul.f32 %v254, 0.5
        %v257 = vsel %vm255, 1, 0
        %v258 = vlaneseq
        %v259 = vshrl.u32 %v258, 7
        %v260 = vsub.s32 3, %v259
        %v261 = vrot.slane %v257, %v260
        %vm262 = vcmp.eq.s32.totalorder %v261, 1
        %v263 = vsel %vm262, %v256, %v254
        %vm264 = vcmask 1047558
        %v265 = vsel %vm264, %v166, -inf
        %vm266 = vcmask 1044480
        %v267 = vsel %vm266, %v167, -inf
        %v268 = vmax.f32 %v265, %v267
        %v269 = vrot.slane %v268, 4
        %v270 = vmax.f32 %v268, %v269
        %v271 = vrot.slane %v270, 2
        %v272 = vmax.f32 %v270, %v271
        %v273 = vrot.slane %v272, 1
        %v274 = vmax.f32 %v272, %v273
        %vm275 = vcmp.eq.f32.partialorder %v166, %v274
        %vm276 = vcmp.eq.f32.partialorder %v167, %v274
        %v277 = vrot.slane %v164, 2
        %v278 = vsel %vm275, %v277, 7
        %v279 = vsel %vm276, %v277, 7
        %v280 = vsel %vm264, %v278, 2147483647
        %v281 = vsel %vm266, %v279, 2147483647
        %vm282 = vcmp.lt.s32.totalorder %v280, %v281
        %v283 = vsel %vm282, %v280, %v281
        %v284 = vrot.slane %v283, 4
        %vm285 = vcmp.lt.s32.totalorder %v283, %v284
        %v286 = vsel %vm285, %v283, %v284
        %v287 = vrot.slane %v286, 2
        %vm288 = vcmp.lt.s32.totalorder %v286, %v287
        %v289 = vsel %vm288, %v286, %v287
        %v290 = vrot.slane %v289, 1
        %vm291 = vcmp.lt.s32.totalorder %v289, %v290
        %v292 = vsel %vm291, %v289, %v290
        %vm293 = vcmp.eq.s32.totalorder %v164, %v292
        %v294 = vsel %vm293, 1, 0
        %v295 = vcvt.s32.f32 %v294
        %vm296 = vcmask 56320
        %v298 = vsel %vm296, %v162, 0
        %vm300 = vcmask 1046528
        %v302 = vsel %vm300, %v295, 0
        %304 = vmatprep.subr.mxu0 0.0
        %305 = vmatpush1.msra.mxu0 %v302
        %306 = vmatprep.subr.mxu0 0.0
        %307 = vmatpush1.msra.mxu0 0.0
        %308 = vmatprep.subr.mxu0 0.0
        %309 = vmatpush1.msra.mxu0 0.0
        %310 = vmatprep.subr.mxu0 0.0
        %311 = vmatpush1.msra.mxu0 0.0
        %312 = vmatprep.subr.mxu0 0.0
        %313 = vmatpush1.msra.mxu0 0.0
        %314 = vmatprep.subr.mxu0 0.0
        %315 = vmatpush1.msra.mxu0 0.0
        %316 = vmatprep.subr.mxu0 0.0
        %317 = vmatpush1.msra.mxu0 0.0
        %318 = vmatprep.subr.mxu0 0.0
        %319 = vmatpush1.msra.mxu0 0.0
        %320 = vmatprep.subr.mxu0 0.0
        %321 = vmatpush1.msra.mxu0 0.0
        %322 = vmatprep.subr.mxu0 0.0
        %323 = vmatpush1.msra.mxu0 0.0
        %324 = vmatprep.subr.mxu0 0.0
        %325 = vmatpush1.msra.mxu0 0.0
        %326 = vmatprep.subr.mxu0 0.0
        %327 = vmatpush1.msra.mxu0 0.0
        %328 = vmatprep.subr.mxu0 0.0
        %329 = vmatpush1.msra.mxu0 0.0
        %330 = vmatprep.subr.mxu0 0.0
        %331 = vmatpush1.msra.mxu0 0.0
        %332 = vmatprep.subr.mxu0 0.0
        %333 = vmatpush1.msra.mxu0 0.0
        %334 = vmatprep.subr.mxu0 0.0
        %335 = vmatpush1.msra.mxu0 0.0
        %336 = vmatprep.subr.mxu0 0.0
        %337 = vmatpush1.msra.mxu0 0.0
        %338 = vmatprep.subr.mxu0 0.0
        %339 = vmatpush1.msra.mxu0 0.0
        %340 = vmatprep.subr.mxu0 0.0
        %341 = vmatpush1.msra.mxu0 0.0
        %342 = vmatprep.subr.mxu0 0.0
        %343 = vmatpush1.msra.mxu0 0.0
        %344 = vmatprep.subr.mxu0 0.0
        %345 = vmatpush1.msra.mxu0 0.0
        %346 = vmatprep.subr.mxu0 0.0
        %347 = vmatpush1.msra.mxu0 0.0
        %348 = vmatprep.subr.mxu0 0.0
        %349 = vmatpush1.msra.mxu0 0.0
        %350 = vmatprep.subr.mxu0 0.0
        %351 = vmatpush1.msra.mxu0 0.0
        %352 = vmatprep.subr.mxu0 0.0
        %353 = vmatpush1.msra.mxu0 0.0
        %354 = vmatprep.subr.mxu0 0.0
        %355 = vmatpush1.msra.mxu0 0.0
        %356 = vmatprep.subr.mxu0 0.0
        %357 = vmatpush1.msra.mxu0 0.0
        %358 = vmatprep.subr.mxu0 0.0
        %359 = vmatpush1.msra.mxu0 0.0
        %360 = vmatprep.subr.mxu0 0.0
        %361 = vmatpush1.msra.mxu0 0.0
        %362 = vmatprep.subr.mxu0 0.0
        %363 = vmatpush1.msra.mxu0 0.0
        %364 = vmatprep.subr.mxu0 0.0
        %365 = vmatpush1.msra.mxu0 0.0
        %366 = vmatprep.subr.mxu0 0.0
        %367 = vmatpush1.msra.mxu0 0.0
        %368 = vmatprep.mubr.f32.mxu0 0.0
        %369 = vmatmul.mubr.f32.gmra.mrb[0].mxu0 %v298
        %v370 = vpop.f32.mrb[0].mxu0
        %v371 = vadd.f32 0.0, %v370
        %v372 = vpop.f32.mrb[0].mxu0
        %373 = vdwg.mxu0
        %vm374 = vcmp.gt.f32.partialorder %v371, 0.5
        %v375 = vmul.f32 %v263, 0.5
        %v376 = vsel %vm374, %v263, %v375
        %v377 = vsub.f32 1.0, %v376
        %378 = vst [vmem:[%s149] sm:$0xff] %v377
        %s379 = scalar_lea.vmem %s154, 24
        %v380 = vld [vmem:[%s379] sm:$0xff]
        %v381 = vld [vmem:[%s379 + $0x8] sm:$0xff]
        %v382 = vld [vmem:[%s379 + $0x10] sm:$0x1f]
        %v383 = vlaneseq
        %v384 = vshrl.u32 %v383, 7
        %v385 = vsub.s32 0, %v384
        %v386 = vrot.slane %v380, %v385
        %v387 = vsub.f32 %v171, %v386
        %v388 = vmul.f32 %v387, %v387
        %v389 = vlaneseq
        %v390 = vshrl.u32 %v389, 7
        %v391 = vsub.s32 1, %v390
        %v392 = vrot.slane %v380, %v391
        %v393 = vsub.f32 %v181, %v392
        %v394 = vmul.f32 %v393, %v393
        %v395 = vadd.f32 %v388, %v394
        %v396 = vlaneseq
        %v397 = vshrl.u32 %v396, 7
        %v398 = vsub.s32 2, %v397
        %v399 = vrot.slane %v380, %v398
        %v400 = vsub.f32 %v192, %v399
        %v401 = vmul.f32 %v400, %v400
        %v402 = vadd.f32 %v395, %v401
        %v403 = vrsqrt.pop %v402
        %v404 = vmul.f32 %v402, %v403
        %vm405 = vcmp.eq.f32.partialorder %v402, inf
        %v406 = vsel %vm405, %v402, %v404
        %vm407 = vcmp.eq.f32.partialorder %v402, 0.0
        %v408 = vand.u32 %v402, 2147483648
        %v409 = vsel %vm407, %v408, %v406
        %v410 = vlaneseq
        %v411 = vshrl.u32 %v410, 7
        %v412 = vsub.s32 0, %v411
        %v413 = vrot.slane %v381, %v412
        %v414 = vsub.f32 %v210, %v413
        %v415 = vmul.f32 %v414, %v414
        %v416 = vlaneseq
        %v417 = vshrl.u32 %v416, 7
        %v418 = vsub.s32 1, %v417
        %v419 = vrot.slane %v381, %v418
        %v420 = vsub.f32 %v220, %v419
        %v421 = vmul.f32 %v420, %v420
        %v422 = vadd.f32 %v415, %v421
        %v423 = vlaneseq
        %v424 = vshrl.u32 %v423, 7
        %v425 = vsub.s32 2, %v424
        %v426 = vrot.slane %v381, %v425
        %v427 = vsub.f32 %v231, %v426
        %v428 = vmul.f32 %v427, %v427
        %v429 = vadd.f32 %v422, %v428
        %v430 = vrsqrt.pop %v429
        %v431 = vmul.f32 %v429, %v430
        %vm432 = vcmp.eq.f32.partialorder %v429, inf
        %v433 = vsel %vm432, %v429, %v431
        %vm434 = vcmp.eq.f32.partialorder %v429, 0.0
        %v435 = vand.u32 %v429, 2147483648
        %v436 = vsel %vm434, %v435, %v433
        %v437 = vadd.f32 %v409, %v436
        %v438 = vsub.f32 0.0, %v437
        %v439 = vadd.f32 %v436, 1e-06
        %v440 = vrcp.pop %v439
        %v441 = vmul.f32 %v438, %v440
        %v442 = vmul.f32 %v441, 1.442695
        %v443 = vpow.pop %v442
        %v444 = vmul.f32 %v443, 0.4
        %vm445 = vcmp.lt.f32.partialorder %v381, 0.5
        %v446 = vmul.f32 %v444, 0.5
        %v447 = vsel %vm445, 1, 0
        %v448 = vlaneseq
        %v449 = vshrl.u32 %v448, 7
        %v450 = vsub.s32 3, %v449
        %v451 = vrot.slane %v447, %v450
        %vm452 = vcmp.eq.s32.totalorder %v451, 1
        %v453 = vsel %vm452, %v446, %v444
        %v454 = vsel %vm264, %v381, -inf
        %v455 = vsel %vm266, %v382, -inf
        %v456 = vmax.f32 %v454, %v455
        %v457 = vrot.slane %v456, 4
        %v458 = vmax.f32 %v456, %v457
        %v459 = vrot.slane %v458, 2
        %v460 = vmax.f32 %v458, %v459
        %v461 = vrot.slane %v460, 1
        %v462 = vmax.f32 %v460, %v461
        %vm463 = vcmp.eq.f32.partialorder %v381, %v462
        %vm464 = vcmp.eq.f32.partialorder %v382, %v462
        %v465 = vsel %vm463, %v277, 7
        %v466 = vsel %vm464, %v277, 7
        %v467 = vsel %vm264, %v465, 2147483647
        %v468 = vsel %vm266, %v466, 2147483647
        %vm469 = vcmp.lt.s32.totalorder %v467, %v468
        %v470 = vsel %vm469, %v467, %v468
        %v471 = vrot.slane %v470, 4
        %vm472 = vcmp.lt.s32.totalorder %v470, %v471
        %v473 = vsel %vm472, %v470, %v471
        %v474 = vrot.slane %v473, 2
        %vm475 = vcmp.lt.s32.totalorder %v473, %v474
        %v476 = vsel %vm475, %v473, %v474
        %v477 = vrot.slane %v476, 1
        %vm478 = vcmp.lt.s32.totalorder %v476, %v477
        %v479 = vsel %vm478, %v476, %v477
        %vm480 = vcmp.eq.s32.totalorder %v164, %v479
        %v481 = vsel %vm480, 1, 0
        %v482 = vcvt.s32.f32 %v481
        %v484 = vsel %vm300, %v482, 0
        %486 = vmatprep.subr.mxu0 0.0
        %487 = vmatpush1.msra.mxu0 %v484
        %488 = vmatprep.subr.mxu0 0.0
        %489 = vmatpush1.msra.mxu0 0.0
        %490 = vmatprep.subr.mxu0 0.0
        %491 = vmatpush1.msra.mxu0 0.0
        %492 = vmatprep.subr.mxu0 0.0
        %493 = vmatpush1.msra.mxu0 0.0
        %494 = vmatprep.subr.mxu0 0.0
        %495 = vmatpush1.msra.mxu0 0.0
        %496 = vmatprep.subr.mxu0 0.0
        %497 = vmatpush1.msra.mxu0 0.0
        %498 = vmatprep.subr.mxu0 0.0
        %499 = vmatpush1.msra.mxu0 0.0
        %500 = vmatprep.subr.mxu0 0.0
        %501 = vmatpush1.msra.mxu0 0.0
        %502 = vmatprep.subr.mxu0 0.0
        %503 = vmatpush1.msra.mxu0 0.0
        %504 = vmatprep.subr.mxu0 0.0
        %505 = vmatpush1.msra.mxu0 0.0
        %506 = vmatprep.subr.mxu0 0.0
        %507 = vmatpush1.msra.mxu0 0.0
        %508 = vmatprep.subr.mxu0 0.0
        %509 = vmatpush1.msra.mxu0 0.0
        %510 = vmatprep.subr.mxu0 0.0
        %511 = vmatpush1.msra.mxu0 0.0
        %512 = vmatprep.subr.mxu0 0.0
        %513 = vmatpush1.msra.mxu0 0.0
        %514 = vmatprep.subr.mxu0 0.0
        %515 = vmatpush1.msra.mxu0 0.0
        %516 = vmatprep.subr.mxu0 0.0
        %517 = vmatpush1.msra.mxu0 0.0
        %518 = vmatprep.subr.mxu0 0.0
        %519 = vmatpush1.msra.mxu0 0.0
        %520 = vmatprep.subr.mxu0 0.0
        %521 = vmatpush1.msra.mxu0 0.0
        %522 = vmatprep.subr.mxu0 0.0
        %523 = vmatpush1.msra.mxu0 0.0
        %524 = vmatprep.subr.mxu0 0.0
        %525 = vmatpush1.msra.mxu0 0.0
        %526 = vmatprep.subr.mxu0 0.0
        %527 = vmatpush1.msra.mxu0 0.0
        %528 = vmatprep.subr.mxu0 0.0
        %529 = vmatpush1.msra.mxu0 0.0
        %530 = vmatprep.subr.mxu0 0.0
        %531 = vmatpush1.msra.mxu0 0.0
        %532 = vmatprep.subr.mxu0 0.0
        %533 = vmatpush1.msra.mxu0 0.0
        %534 = vmatprep.subr.mxu0 0.0
        %535 = vmatpush1.msra.mxu0 0.0
        %536 = vmatprep.subr.mxu0 0.0
        %537 = vmatpush1.msra.mxu0 0.0
        %538 = vmatprep.subr.mxu0 0.0
        %539 = vmatpush1.msra.mxu0 0.0
        %540 = vmatprep.subr.mxu0 0.0
        %541 = vmatpush1.msra.mxu0 0.0
        %542 = vmatprep.subr.mxu0 0.0
        %543 = vmatpush1.msra.mxu0 0.0
        %544 = vmatprep.subr.mxu0 0.0
        %545 = vmatpush1.msra.mxu0 0.0
        %546 = vmatprep.subr.mxu0 0.0
        %547 = vmatpush1.msra.mxu0 0.0
        %548 = vmatprep.subr.mxu0 0.0
        %549 = vmatpush1.msra.mxu0 0.0
        %550 = vmatprep.mubr.f32.mxu0 0.0
        %551 = vmatmul.mubr.f32.gmra.mrb[0].mxu0 %v298
        %v552 = vpop.f32.mrb[0].mxu0
        %v553 = vadd.f32 0.0, %v552
        %v554 = vpop.f32.mrb[0].mxu0
        %555 = vdwg.mxu0
        %vm556 = vcmp.gt.f32.partialorder %v553, 0.5
        %v557 = vmul.f32 %v453, 0.5
        %v558 = vsel %vm556, %v453, %v557
        %v559 = vsub.f32 1.0, %v558
        %s560 = scalar_lea.vmem %s149, 8 [#allocation2]
        %561 = vst [vmem:[%s560] sm:$0xff] %v559
        %s562 = scalar_lea.vmem %s154, 48
        %v563 = vld [vmem:[%s562] sm:$0xff]
        %v564 = vld [vmem:[%s562 + $0x8] sm:$0xff]
        %v565 = vld [vmem:[%s562 + $0x10] sm:$0x1f]
        %v566 = vlaneseq
        %v567 = vshrl.u32 %v566, 7
        %v568 = vsub.s32 0, %v567
        %v569 = vrot.slane %v563, %v568
        %v570 = vsub.f32 %v171, %v569
        %v571 = vmul.f32 %v570, %v570
        %v572 = vlaneseq
        %v573 = vshrl.u32 %v572, 7
        %v574 = vsub.s32 1, %v573
        %v575 = vrot.slane %v563, %v574
        %v576 = vsub.f32 %v181, %v575
        %v577 = vmul.f32 %v576, %v576
        %v578 = vadd.f32 %v571, %v577
        %v579 = vlaneseq
        %v580 = vshrl.u32 %v579, 7
        %v581 = vsub.s32 2, %v580
        %v582 = vrot.slane %v563, %v581
        %v583 = vsub.f32 %v192, %v582
        %v584 = vmul.f32 %v583, %v583
        %v585 = vadd.f32 %v578, %v584
        %v586 = vrsqrt.pop %v585
        %v587 = vmul.f32 %v585, %v586
        %vm588 = vcmp.eq.f32.partialorder %v585, inf
        %v589 = vsel %vm588, %v585, %v587
        %vm590 = vcmp.eq.f32.partialorder %v585, 0.0
        %v591 = vand.u32 %v585, 2147483648
        %v592 = vsel %vm590, %v591, %v589
        %v593 = vlaneseq
        %v594 = vshrl.u32 %v593, 7
        %v595 = vsub.s32 0, %v594
        %v596 = vrot.slane %v564, %v595
        %v597 = vsub.f32 %v210, %v596
        %v598 = vmul.f32 %v597, %v597
        %v599 = vlaneseq
        %v600 = vshrl.u32 %v599, 7
        %v601 = vsub.s32 1, %v600
        %v602 = vrot.slane %v564, %v601
        %v603 = vsub.f32 %v220, %v602
        %v604 = vmul.f32 %v603, %v603
        %v605 = vadd.f32 %v598, %v604
        %v606 = vlaneseq
        %v607 = vshrl.u32 %v606, 7
        %v608 = vsub.s32 2, %v607
        %v609 = vrot.slane %v564, %v608
        %v610 = vsub.f32 %v231, %v609
        %v611 = vmul.f32 %v610, %v610
        %v612 = vadd.f32 %v605, %v611
        %v613 = vrsqrt.pop %v612
        %v614 = vmul.f32 %v612, %v613
        %vm615 = vcmp.eq.f32.partialorder %v612, inf
        %v616 = vsel %vm615, %v612, %v614
        %vm617 = vcmp.eq.f32.partialorder %v612, 0.0
        %v618 = vand.u32 %v612, 2147483648
        %v619 = vsel %vm617, %v618, %v616
        %v620 = vadd.f32 %v592, %v619
        %v621 = vsub.f32 0.0, %v620
        %v622 = vadd.f32 %v619, 1e-06
        %v623 = vrcp.pop %v622
        %v624 = vmul.f32 %v621, %v623
        %v625 = vmul.f32 %v624, 1.442695
        %v626 = vpow.pop %v625
        %v627 = vmul.f32 %v626, 0.4
        %vm628 = vcmp.lt.f32.partialorder %v564, 0.5
        %v629 = vmul.f32 %v627, 0.5
        %v630 = vsel %vm628, 1, 0
        %v631 = vlaneseq
        %v632 = vshrl.u32 %v631, 7
        %v633 = vsub.s32 3, %v632
        %v634 = vrot.slane %v630, %v633
        %vm635 = vcmp.eq.s32.totalorder %v634, 1
        %v636 = vsel %vm635, %v629, %v627
        %v637 = vsel %vm264, %v564, -inf
        %v638 = vsel %vm266, %v565, -inf
        %v639 = vmax.f32 %v637, %v638
        %v640 = vrot.slane %v639, 4
        %v641 = vmax.f32 %v639, %v640
        %v642 = vrot.slane %v641, 2
        %v643 = vmax.f32 %v641, %v642
        %v644 = vrot.slane %v643, 1
        %v645 = vmax.f32 %v643, %v644
        %vm646 = vcmp.eq.f32.partialorder %v564, %v645
        %vm647 = vcmp.eq.f32.partialorder %v565, %v645
        %v648 = vsel %vm646, %v277, 7
        %v649 = vsel %vm647, %v277, 7
        %v650 = vsel %vm264, %v648, 2147483647
        %v651 = vsel %vm266, %v649, 2147483647
        %vm652 = vcmp.lt.s32.totalorder %v650, %v651
        %v653 = vsel %vm652, %v650, %v651
        %v654 = vrot.slane %v653, 4
        %vm655 = vcmp.lt.s32.totalorder %v653, %v654
        %v656 = vsel %vm655, %v653, %v654
        %v657 = vrot.slane %v656, 2
        %vm658 = vcmp.lt.s32.totalorder %v656, %v657
        %v659 = vsel %vm658, %v656, %v657
        %v660 = vrot.slane %v659, 1
        %vm661 = vcmp.lt.s32.totalorder %v659, %v660
        %v662 = vsel %vm661, %v659, %v660
        %vm663 = vcmp.eq.s32.totalorder %v164, %v662
        %v664 = vsel %vm663, 1, 0
        %v665 = vcvt.s32.f32 %v664
        %v667 = vsel %vm300, %v665, 0
        %669 = vmatprep.subr.mxu0 0.0
        %670 = vmatpush1.msra.mxu0 %v667
        %671 = vmatprep.subr.mxu0 0.0
        %672 = vmatpush1.msra.mxu0 0.0
        %673 = vmatprep.subr.mxu0 0.0
        %674 = vmatpush1.msra.mxu0 0.0
        %675 = vmatprep.subr.mxu0 0.0
        %676 = vmatpush1.msra.mxu0 0.0
        %677 = vmatprep.subr.mxu0 0.0
        %678 = vmatpush1.msra.mxu0 0.0
        %679 = vmatprep.subr.mxu0 0.0
        %680 = vmatpush1.msra.mxu0 0.0
        %681 = vmatprep.subr.mxu0 0.0
        %682 = vmatpush1.msra.mxu0 0.0
        %683 = vmatprep.subr.mxu0 0.0
        %684 = vmatpush1.msra.mxu0 0.0
        %685 = vmatprep.subr.mxu0 0.0
        %686 = vmatpush1.msra.mxu0 0.0
        %687 = vmatprep.subr.mxu0 0.0
        %688 = vmatpush1.msra.mxu0 0.0
        %689 = vmatprep.subr.mxu0 0.0
        %690 = vmatpush1.msra.mxu0 0.0
        %691 = vmatprep.subr.mxu0 0.0
        %692 = vmatpush1.msra.mxu0 0.0
        %693 = vmatprep.subr.mxu0 0.0
        %694 = vmatpush1.msra.mxu0 0.0
        %695 = vmatprep.subr.mxu0 0.0
        %696 = vmatpush1.msra.mxu0 0.0
        %697 = vmatprep.subr.mxu0 0.0
        %698 = vmatpush1.msra.mxu0 0.0
        %699 = vmatprep.subr.mxu0 0.0
        %700 = vmatpush1.msra.mxu0 0.0
        %701 = vmatprep.subr.mxu0 0.0
        %702 = vmatpush1.msra.mxu0 0.0
        %703 = vmatprep.subr.mxu0 0.0
        %704 = vmatpush1.msra.mxu0 0.0
        %705 = vmatprep.subr.mxu0 0.0
        %706 = vmatpush1.msra.mxu0 0.0
        %707 = vmatprep.subr.mxu0 0.0
        %708 = vmatpush1.msra.mxu0 0.0
        %709 = vmatprep.subr.mxu0 0.0
        %710 = vmatpush1.msra.mxu0 0.0
        %711 = vmatprep.subr.mxu0 0.0
        %712 = vmatpush1.msra.mxu0 0.0
        %713 = vmatprep.subr.mxu0 0.0
        %714 = vmatpush1.msra.mxu0 0.0
        %715 = vmatprep.subr.mxu0 0.0
        %716 = vmatpush1.msra.mxu0 0.0
        %717 = vmatprep.subr.mxu0 0.0
        %718 = vmatpush1.msra.mxu0 0.0
        %719 = vmatprep.subr.mxu0 0.0
        %720 = vmatpush1.msra.mxu0 0.0
        %721 = vmatprep.subr.mxu0 0.0
        %722 = vmatpush1.msra.mxu0 0.0
        %723 = vmatprep.subr.mxu0 0.0
        %724 = vmatpush1.msra.mxu0 0.0
        %725 = vmatprep.subr.mxu0 0.0
        %726 = vmatpush1.msra.mxu0 0.0
        %727 = vmatprep.subr.mxu0 0.0
        %728 = vmatpush1.msra.mxu0 0.0
        %729 = vmatprep.subr.mxu0 0.0
        %730 = vmatpush1.msra.mxu0 0.0
        %731 = vmatprep.subr.mxu0 0.0
        %732 = vmatpush1.msra.mxu0 0.0
        %733 = vmatprep.mubr.f32.mxu0 0.0
        %734 = vmatmul.mubr.f32.gmra.mrb[0].mxu0 %v298
        %v735 = vpop.f32.mrb[0].mxu0
        %v736 = vadd.f32 0.0, %v735
        %v737 = vpop.f32.mrb[0].mxu0
        %738 = vdwg.mxu0
        %vm739 = vcmp.gt.f32.partialorder %v736, 0.5
        %v740 = vmul.f32 %v636, 0.5
        %v741 = vsel %vm739, %v636, %v740
        %v742 = vsub.f32 1.0, %v741
        %s743 = scalar_lea.vmem %s149, 16 [#allocation2]
        %744 = vst [vmem:[%s743] sm:$0xff] %v742
        %s745 = sand.u32 %s76, 1
        %s746 = scalar_lea.sflag [#allocation3], %s745
        %s747 = sand.u32 %s76, 1
        %s748 = smul.addr %s747, 24
        %s749 = scalar_lea.vmem [#allocation2], %s748
        // Predicated region
        $region29: #{tpu_custom_call.1} parent=27 // pred_check
          %p750 = pneg %p86
        $region30: #{tpu_custom_call.1} parent=27 // pred_check_branch
          %752 = sbr.rel (%p750) target = $region32
        $region31: #{tpu_custom_call.1} parent=27 // pred_region
          %s754 = ssub.s32 384, 384
          %755 = vsyncadd %s746, %s754
          %s756 = smul.addr %s16, 3
          %s757 = smul.addr %s756, 128
          %s758 = scalar_lea.hbm %s2, %s757
          %s759 = sshll.u32 %s749, 4
          %s760 = int_to_ptr.vmem [resolvable:$true] %s759
          %765 = dma.vmem_to_hbm [thread:$0]  %s760, 384, %s758, %s746, 128, 128, 8
        $region32: #{tpu_custom_call.1} parent=27 // pred_fallthru
          _
      $region28: #{tpu_custom_call.1} parent=5 // pred_fallthru
        _
      %p766 = scmp.le.s32.totalorder 2, %s11
      // Predicated region
      $region33: #{tpu_custom_call.1} parent=5 // pred_check
        %p767 = pneg %p766
      $region34: #{tpu_custom_call.1} parent=5 // pred_check_branch
        %769 = sbr.rel (%p767) target = $region36
      $region35: #{tpu_custom_call.1} parent=5 // pred_region
        %s770 = ssub.s32 %s11, 2
        // Predicated region
        $region37: #{tpu_custom_call.1} parent=35 // pred_check
          %p771 = pneg %p92
        $region38: #{tpu_custom_call.1} parent=35 // pred_check_branch
          %773 = sbr.rel (%p771) target = $region40
        $region39: #{tpu_custom_call.1} parent=35 // pred_region
          %s774 = sand.u32 %s77, 1
          %s775 = scalar_lea.sflag [#allocation3], %s774
          %s776 = sand.u32 %s77, 1
          %s777 = smul.addr %s776, 24
          %s778 = scalar_lea.vmem [#allocation2], %s777
          %779 = dma.done %s775, 384
        $region40: #{tpu_custom_call.1} parent=35 // pred_fallthru
          _
      $region36: #{tpu_custom_call.1} parent=5 // pred_fallthru
        _
    $region6: #{tpu_custom_call.1} parent=1 // loop_footer
      %s15 = sadd.s32 1, %s11
    $region7: #{tpu_custom_call.1} parent=1 // loop_footer_branch
      %10 = sbr.rel target = $region3
    $region8: #{tpu_custom_call.1} parent=1 // loop_exit
      _
    %780 = vsyncpa [#allocation3], 1
    %s781 = scalar_lea.sflag [#allocation3], 1
    %782 = vsyncpa %s781, 1

</llo_original>
